<compile_context>
chip_gen: v6e
topology: v6e:2x2x1
jax: 0.10.0
libtpu: 0.0.40
codegen_flags: <defaults>
</compile_context>

<pallas_src>
import functools

import jax
import jax.numpy as jnp
from jax.experimental import pallas as pl
from jax.experimental.pallas import tpu as pltpu


def conv_bn_relu_kernel(x_ref, w_ref, gb_ref, o_ref, *, eps):
    """x_ref: (Cin, M) f32, w_ref: (Cout, Cin) f32,
    gb_ref: (Cout, 2) f32 [gamma | beta], o_ref: (Cout, M) f32."""
    # In-kernel bf16 cast (native MXU dtype); accumulate in f32.
    xT = x_ref[...].astype(jnp.bfloat16)                 # (Cin, M)
    w = w_ref[...].astype(jnp.bfloat16)                  # (Cout, Cin)
    yT = jnp.dot(w, xT, preferred_element_type=jnp.float32)   # (Cout, M)

    # BatchNorm (training mode): biased batch statistics over the M = N*H*W
    # axis (now the lane axis).  Block == full array, so every column is
    # valid -> no masking needed.
    inv_m = 1.0 / yT.shape[1]
    mean = jnp.sum(yT, axis=1, keepdims=True) * inv_m          # (Cout, 1)
    var = jnp.sum(yT * yT, axis=1, keepdims=True) * inv_m - mean * mean
    var = jnp.maximum(var, 0.0)                                # cancellation guard
    inv_std = jax.lax.rsqrt(var + eps)

    # Fold the BN affine into one per-channel scale/shift.
    gamma = gb_ref[:, 0:1]                                     # (Cout, 1)
    beta = gb_ref[:, 1:2]                                      # (Cout, 1)
    scale = gamma * inv_std
    shift = beta - mean * scale
    o_ref[...] = jnp.maximum(yT * scale + shift, 0.0)


def conv2d_bn_relu(x_nchw, weight, gamma, beta, eps=1e-5):
    """x_nchw: (N, Cin, H, W), weight: (Cout, Cin, 1, 1) -> (N, Cout, H, W)."""
    N, C, H, W = x_nchw.shape
    Cout = weight.shape[0]
    M = N * H * W

    if N == 1:
        # Zero-movement: (1, C, H, W) -> (C, H*W) is already x^T.
        xT = x_nchw.reshape(C, M)
    else:
        # General case needs one transpose to gather all batch columns.
        xT = jnp.transpose(x_nchw, (1, 0, 2, 3)).reshape(C, M)

    w = weight.reshape(Cout, C)                                # zero-movement
    gb = jnp.stack(
        [gamma.astype(jnp.float32), beta.astype(jnp.float32)], axis=1
    )                                                          # (Cout, 2)

    kernel = functools.partial(conv_bn_relu_kernel, eps=eps)

    # Single block: block_shape == full array shape (allowed by the (8,128)
    # rule), so no padding and no post-kernel slice.  At M = 49 the whole
    # problem is ~180 KB and the kernel body is essentially free.
    # TODO(synk): if M (= N*H*W) grows large, tile over M with persistent
    # per-channel sum/sumsq VMEM scratch + a second normalize sweep (per-tile
    # stats would be wrong), sized for v7x's 64 MiB VMEM, and expose a
    # "parallel" axis so the second v7x TensorCore is used.
    # TODO(synk): PyTorch training-mode BN also updates running_mean/var
    # buffers; those side outputs are not emitted here.
    out = pl.pallas_call(
        kernel,
        out_shape=jax.ShapeDtypeStruct((Cout, M), jnp.float32),
        grid=(1,),
        in_specs=[
            pl.BlockSpec((C, M), lambda i: (0, 0)),
            pl.BlockSpec((Cout, C), lambda i: (0, 0)),
            pl.BlockSpec((Cout, 2), lambda i: (0, 0)),
        ],
        out_specs=pl.BlockSpec((Cout, M), lambda i: (0, 0)),
        compiler_params=pltpu.CompilerParams(
            dimension_semantics=("arbitrary",)),
    )(xT, w, gb)

    if N == 1:
        # Zero-movement: (Cout, H*W) -> (1, Cout, H, W).
        return out.reshape(1, Cout, H, W)
    return jnp.transpose(out.reshape(Cout, N, H, W), (1, 0, 2, 3))


if __name__ == "__main__":
    key = jax.random.PRNGKey(0)
    k_x, k_w, k_g, k_b = jax.random.split(key, 4)

    # Shapes implied by the module: Conv2d(232, 232, 1x1) on (1, 232, 7, 7).
    N, C, H, W = 1, 232, 7, 7
    Cout = 232

    x274 = jax.random.normal(k_x, (N, C, H, W), dtype=jnp.float32)
    # Deterministic synthetic parameters (not a checkpoint load).
    conv_weight = jax.random.normal(k_w, (Cout, C, 1, 1), dtype=jnp.float32) * 0.05
    bn_gamma = 1.0 + 0.1 * jax.random.normal(k_g, (Cout,), dtype=jnp.float32)
    bn_beta = 0.1 * jax.random.normal(k_b, (Cout,), dtype=jnp.float32)

    out = conv2d_bn_relu(x274, conv_weight, bn_gamma, bn_beta, eps=1e-5)
    out = jax.block_until_ready(out)

    assert out.shape == (N, Cout, H, W)
    assert bool(jnp.all(jnp.isfinite(out)))
    assert bool(jnp.all(out >= 0.0))
    print("KERNEL_OK")
</pallas_src>

<mosaic_0001>
module attributes {stable_mosaic.version = 11 : i64} {
  func.func @conv_bn_relu_kernel(%arg0: i32, %arg1: memref<232x49xf32, #tpu.memory_space<vmem>>, %arg2: memref<232x232xf32, #tpu.memory_space<vmem>>, %arg3: memref<232x2xf32, #tpu.memory_space<vmem>>, %arg4: memref<232x49xf32, #tpu.memory_space<vmem>>) attributes {dimension_semantics = [#tpu.dimension_semantics<arbitrary>], iteration_bounds = array<i64: 1>, scalar_prefetch = 0 : i64, scratch_operands = 0 : i64, tpu.core_type = #tpu.core_type<tc>, window_params = [{pipeline_mode = #tpu.pipeline_mode<synchronous>, transform_indices = @transform_0, window_bounds = array<i64: 232, 49>}, {pipeline_mode = #tpu.pipeline_mode<synchronous>, transform_indices = @transform_1, window_bounds = array<i64: 232, 232>}, {pipeline_mode = #tpu.pipeline_mode<synchronous>, transform_indices = @transform_2, window_bounds = array<i64: 232, 2>}, {pipeline_mode = #tpu.pipeline_mode<synchronous>, transform_indices = @transform_3, window_bounds = array<i64: 232, 49>}]} {
    %c0 = arith.constant 0 : index
    %c0_0 = arith.constant 0 : index
    %0 = vector.load %arg1[%c0, %c0_0] : memref<232x49xf32, #tpu.memory_space<vmem>>, vector<232x49xf32>
    %1 = arith.truncf %0 : vector<232x49xf32> to vector<232x49xbf16>
    %c0_1 = arith.constant 0 : index
    %c0_2 = arith.constant 0 : index
    %2 = vector.load %arg2[%c0_1, %c0_2] : memref<232x232xf32, #tpu.memory_space<vmem>>, vector<232x232xf32>
    %3 = arith.truncf %2 : vector<232x232xf32> to vector<232x232xbf16>
    %cst = arith.constant dense<0.000000e+00> : vector<232x49xf32>
    %4 = tpu.matmul %3, %1, %cst {dimension_numbers = #tpu.dot_dimension_numbers<[1], [0], [0], [1], [0, 0, 1, 1], [], []>} : vector<232x232xbf16>, vector<232x49xbf16>, vector<232x49xf32> -> vector<232x49xf32>
    %cst_3 = arith.constant dense<0.000000e+00> : vector<232xf32>
    %5 = vector.multi_reduction <add>, %4, %cst_3 [1] : vector<232x49xf32> to vector<232xf32>
    %6 = vector.shape_cast %5 : vector<232xf32> to vector<232x1xf32>
    %cst_4 = arith.constant 0.0204081628 : f32
    %7 = vector.broadcast %cst_4 : f32 to vector<232x1xf32>
    %8 = arith.mulf %6, %7 : vector<232x1xf32>
    %9 = arith.mulf %4, %4 : vector<232x49xf32>
    %cst_5 = arith.constant dense<0.000000e+00> : vector<232xf32>
    %10 = vector.multi_reduction <add>, %9, %cst_5 [1] : vector<232x49xf32> to vector<232xf32>
    %11 = vector.shape_cast %10 : vector<232xf32> to vector<232x1xf32>
    %cst_6 = arith.constant 0.0204081628 : f32
    %12 = vector.broadcast %cst_6 : f32 to vector<232x1xf32>
    %13 = arith.mulf %11, %12 : vector<232x1xf32>
    %14 = arith.mulf %8, %8 : vector<232x1xf32>
    %15 = arith.subf %13, %14 : vector<232x1xf32>
    %cst_7 = arith.constant 0.000000e+00 : f32
    %16 = vector.broadcast %cst_7 : f32 to vector<232x1xf32>
    %17 = arith.maximumf %15, %16 : vector<232x1xf32>
    %cst_8 = arith.constant 9.99999974E-6 : f32
    %18 = vector.broadcast %cst_8 : f32 to vector<232x1xf32>
    %19 = arith.addf %17, %18 : vector<232x1xf32>
    %20 = math.rsqrt %19 : vector<232x1xf32>
    %c0_9 = arith.constant 0 : index
    %c0_10 = arith.constant 0 : index
    %21 = vector.load %arg3[%c0_9, %c0_10] : memref<232x2xf32, #tpu.memory_space<vmem>>, vector<232x1xf32>
    %c0_11 = arith.constant 0 : index
    %c1 = arith.constant 1 : index
    %22 = vector.load %arg3[%c0_11, %c1] : memref<232x2xf32, #tpu.memory_space<vmem>>, vector<232x1xf32>
    %23 = arith.mulf %21, %20 : vector<232x1xf32>
    %24 = arith.mulf %8, %23 : vector<232x1xf32>
    %25 = arith.subf %22, %24 : vector<232x1xf32>
    %26 = vector.broadcast %23 : vector<232x1xf32> to vector<232x49xf32>
    %27 = arith.mulf %4, %26 : vector<232x49xf32>
    %28 = vector.broadcast %25 : vector<232x1xf32> to vector<232x49xf32>
    %29 = arith.addf %27, %28 : vector<232x49xf32>
    %cst_12 = arith.constant 0.000000e+00 : f32
    %30 = vector.broadcast %cst_12 : f32 to vector<232x49xf32>
    %31 = arith.maximumf %29, %30 : vector<232x49xf32>
    %c0_13 = arith.constant 0 : index
    %c0_14 = arith.constant 0 : index
    %32 = vector.load %arg4[%c0_13, %c0_14] : memref<232x49xf32, #tpu.memory_space<vmem>>, vector<232x49xf32>
    tpu.vector_store %arg4[%c0_13, %c0_14], %31 {strides = array<i32>} : memref<232x49xf32, #tpu.memory_space<vmem>>, vector<232x49xf32>,
    return
  }
  func.func @transform_0(%arg0: i32) -> (i32, i32) {
    %c0_i32 = arith.constant 0 : i32
    %c0_i32_0 = arith.constant 0 : i32
    %c0_i32_1 = arith.constant 0 : i32
    return %c0_i32, %c0_i32_0 : i32, i32
  }
  func.func @transform_1(%arg0: i32) -> (i32, i32) {
    %c0_i32 = arith.constant 0 : i32
    %c0_i32_0 = arith.constant 0 : i32
    %c0_i32_1 = arith.constant 0 : i32
    return %c0_i32, %c0_i32_0 : i32, i32
  }
  func.func @transform_2(%arg0: i32) -> (i32, i32) {
    %c0_i32 = arith.constant 0 : i32
    %c0_i32_0 = arith.constant 0 : i32
    %c0_i32_1 = arith.constant 0 : i32
    return %c0_i32, %c0_i32_0 : i32, i32
  }
  func.func @transform_3(%arg0: i32) -> (i32, i32) {
    %c0_i32 = arith.constant 0 : i32
    %c0_i32_0 = arith.constant 0 : i32
    %c0_i32_1 = arith.constant 0 : i32
    return %c0_i32, %c0_i32_0 : i32, i32
  }
}

</mosaic_0001>

<llo_original>
// kernel: tpu_custom_call.1
$region0: #{tpu_custom_call.1}
  #allocation0 [shape = 'u32[]', space=smem, size = 0x4, offset = 0x4, fixed_abs, tag = 'smem constant byte address 0x4 - core index']
  #allocation1 [shape = 'u32[144,128]{1,0:T(1,128)}', space=vmem, size = 0x12000, scoped, tag = 'internal scratch']
  %s0 = inlined_call_operand.vmem [shape: f32[232,49], index: 0, kind: input, shape index: {}]
  %s1 = inlined_call_operand.vmem [shape: f32[232,232], index: 1, kind: input, shape index: {}]
  %s2 = inlined_call_operand.vmem [shape: f32[232,2], index: 2, kind: input, shape index: {}]
  %s3 = inlined_call_operand.vmem [shape: f32[232,49], index: 3, kind: output, shape index: {}]
  %s4 = sld [smem:[#allocation0]]
  $region22: #{tpu_custom_call.1} parent=0
    _
  %s6 = ssub.s32 1, %s4
  %s7 = scalar_select 0, %s6, %s4
  // Predicated region
  $region2: #{tpu_custom_call.1} parent=0 // pred_check
    _
  $region3: #{tpu_custom_call.1} parent=0 // pred_check_branch
    %9 = sbr.rel (0) target = $region5
  $region4: #{tpu_custom_call.1} parent=0 // pred_region
    _
  $region5: #{tpu_custom_call.1} parent=0 // pred_fallthru
    _
  // Predicated region
  $region6: #{tpu_custom_call.1} parent=0 // pred_check
    _
  $region7: #{tpu_custom_call.1} parent=0 // pred_check_branch
    %11 = sbr.rel (0) target = $region9
  $region8: #{tpu_custom_call.1} parent=0 // pred_region
    _
  $region9: #{tpu_custom_call.1} parent=0 // pred_fallthru
    _
  // Predicated region
  $region10: #{tpu_custom_call.1} parent=0 // pred_check
    _
  $region11: #{tpu_custom_call.1} parent=0 // pred_check_branch
    %13 = sbr.rel (0) target = $region13
  $region12: #{tpu_custom_call.1} parent=0 // pred_region
    _
  $region13: #{tpu_custom_call.1} parent=0 // pred_fallthru
    _
  %v15 = vld [vmem:[%s0] sm:$0xff]
  %v16 = vld [vmem:[%s0 + $0x8] sm:$0xff]
  %v17 = vld [vmem:[%s0 + $0x10] sm:$0xff]
  %v18 = vld [vmem:[%s0 + $0x18] sm:$0xff]
  %v19 = vld [vmem:[%s0 + $0x20] sm:$0xff]
  %v20 = vld [vmem:[%s0 + $0x28] sm:$0xff]
  %v21 = vld [vmem:[%s0 + $0x30] sm:$0xff]
  %v22 = vld [vmem:[%s0 + $0x38] sm:$0xff]
  %v23 = vld [vmem:[%s0 + $0x40] sm:$0xff]
  %v24 = vld [vmem:[%s0 + $0x48] sm:$0xff]
  %v25 = vld [vmem:[%s0 + $0x50] sm:$0xff]
  %v26 = vld [vmem:[%s0 + $0x58] sm:$0xff]
  %v27 = vld [vmem:[%s0 + $0x60] sm:$0xff]
  %v28 = vld [vmem:[%s0 + $0x68] sm:$0xff]
  %v29 = vld [vmem:[%s0 + $0x70] sm:$0xff]
  %v30 = vld [vmem:[%s0 + $0x78] sm:$0xff]
  %v31 = vld [vmem:[%s0 + $0x80] sm:$0xff]
  %v32 = vld [vmem:[%s0 + $0x88] sm:$0xff]
  %v33 = vld [vmem:[%s0 + $0x90] sm:$0xff]
  %v34 = vld [vmem:[%s0 + $0x98] sm:$0xff]
  %v35 = vld [vmem:[%s0 + $0xa0] sm:$0xff]
  %v36 = vld [vmem:[%s0 + $0xa8] sm:$0xff]
  %v37 = vld [vmem:[%s0 + $0xb0] sm:$0xff]
  %v38 = vld [vmem:[%s0 + $0xb8] sm:$0xff]
  %v39 = vld [vmem:[%s0 + $0xc0] sm:$0xff]
  %v40 = vld [vmem:[%s0 + $0xc8] sm:$0xff]
  %v41 = vld [vmem:[%s0 + $0xd0] sm:$0xff]
  %v42 = vld [vmem:[%s0 + $0xd8] sm:$0xff]
  %v43 = vld [vmem:[%s0 + $0xe0] sm:$0xff]
  %v44 = vpack.c.bf16 %v16, %v15
  %v45 = vpack.c.bf16 %v18, %v17
  %v46 = vpack.c.bf16 %v20, %v19
  %v47 = vpack.c.bf16 %v22, %v21
  %v48 = vpack.c.bf16 %v24, %v23
  %v49 = vpack.c.bf16 %v26, %v25
  %v50 = vpack.c.bf16 %v28, %v27
  %v51 = vpack.c.bf16 %v30, %v29
  %v52 = vpack.c.bf16 %v32, %v31
  %v53 = vpack.c.bf16 %v34, %v33
  %v54 = vpack.c.bf16 %v36, %v35
  %v55 = vpack.c.bf16 %v38, %v37
  %v56 = vpack.c.bf16 %v40, %v39
  %v57 = vpack.c.bf16 %v42, %v41
  %v58 = vpack.c.bf16 %v43, %v43
  %v59 = vld [vmem:[%s1] sm:$0xff]
  %v60 = vld [vmem:[%s1 + $0x8] sm:$0xff]
  %v61 = vld [vmem:[%s1 + $0x10] sm:$0xff]
  %v62 = vld [vmem:[%s1 + $0x18] sm:$0xff]
  %v63 = vld [vmem:[%s1 + $0x20] sm:$0xff]
  %v64 = vld [vmem:[%s1 + $0x28] sm:$0xff]
  %v65 = vld [vmem:[%s1 + $0x30] sm:$0xff]
  %v66 = vld [vmem:[%s1 + $0x38] sm:$0xff]
  %v67 = vld [vmem:[%s1 + $0x40] sm:$0xff]
  %v68 = vld [vmem:[%s1 + $0x48] sm:$0xff]
  %v69 = vld [vmem:[%s1 + $0x50] sm:$0xff]
  %v70 = vld [vmem:[%s1 + $0x58] sm:$0xff]
  %v71 = vld [vmem:[%s1 + $0x60] sm:$0xff]
  %v72 = vld [vmem:[%s1 + $0x68] sm:$0xff]
  %v73 = vld [vmem:[%s1 + $0x70] sm:$0xff]
  %v74 = vld [vmem:[%s1 + $0x78] sm:$0xff]
  %v75 = vld [vmem:[%s1 + $0x80] sm:$0xff]
  %v76 = vld [vmem:[%s1 + $0x88] sm:$0xff]
  %v77 = vld [vmem:[%s1 + $0x90] sm:$0xff]
  %v78 = vld [vmem:[%s1 + $0x98] sm:$0xff]
  %v79 = vld [vmem:[%s1 + $0xa0] sm:$0xff]
  %v80 = vld [vmem:[%s1 + $0xa8] sm:$0xff]
  %v81 = vld [vmem:[%s1 + $0xb0] sm:$0xff]
  %v82 = vld [vmem:[%s1 + $0xb8] sm:$0xff]
  %v83 = vld [vmem:[%s1 + $0xc0] sm:$0xff]
  %v84 = vld [vmem:[%s1 + $0xc8] sm:$0xff]
  %v85 = vld [vmem:[%s1 + $0xd0] sm:$0xff]
  %v86 = vld [vmem:[%s1 + $0xd8] sm:$0xff]
  %v87 = vld [vmem:[%s1 + $0xe0] sm:$0xff]
  %v88 = vld [vmem:[%s1 + $0xe8] sm:$0xff]
  %v89 = vld [vmem:[%s1 + $0xf0] sm:$0xff]
  %v90 = vld [vmem:[%s1 + $0xf8] sm:$0xff]
  %v91 = vld [vmem:[%s1 + $0x100] sm:$0xff]
  %v92 = vld [vmem:[%s1 + $0x108] sm:$0xff]
  %v93 = vld [vmem:[%s1 + $0x110] sm:$0xff]
  %v94 = vld [vmem:[%s1 + $0x118] sm:$0xff]
  %v95 = vld [vmem:[%s1 + $0x120] sm:$0xff]
  %v96 = vld [vmem:[%s1 + $0x128] sm:$0xff]
  %v97 = vld [vmem:[%s1 + $0x130] sm:$0xff]
  %v98 = vld [vmem:[%s1 + $0x138] sm:$0xff]
  %v99 = vld [vmem:[%s1 + $0x140] sm:$0xff]
  %v100 = vld [vmem:[%s1 + $0x148] sm:$0xff]
  %v101 = vld [vmem:[%s1 + $0x150] sm:$0xff]
  %v102 = vld [vmem:[%s1 + $0x158] sm:$0xff]
  %v103 = vld [vmem:[%s1 + $0x160] sm:$0xff]
  %v104 = vld [vmem:[%s1 + $0x168] sm:$0xff]
  %v105 = vld [vmem:[%s1 + $0x170] sm:$0xff]
  %v106 = vld [vmem:[%s1 + $0x178] sm:$0xff]
  %v107 = vld [vmem:[%s1 + $0x180] sm:$0xff]
  %v108 = vld [vmem:[%s1 + $0x188] sm:$0xff]
  %v109 = vld [vmem:[%s1 + $0x190] sm:$0xff]
  %v110 = vld [vmem:[%s1 + $0x198] sm:$0xff]
  %v111 = vld [vmem:[%s1 + $0x1a0] sm:$0xff]
  %v112 = vld [vmem:[%s1 + $0x1a8] sm:$0xff]
  %v113 = vld [vmem:[%s1 + $0x1b0] sm:$0xff]
  %v114 = vld [vmem:[%s1 + $0x1b8] sm:$0xff]
  %v115 = vld [vmem:[%s1 + $0x1c0] sm:$0xff]
  %v116 = vld [vmem:[%s1 + $0x1c8] sm:$0xff]
  %v117 = vpack.c.bf16 %v61, %v59
  %v118 = vpack.c.bf16 %v62, %v60
  %v119 = vpack.c.bf16 %v65, %v63
  %v120 = vpack.c.bf16 %v66, %v64
  %v121 = vpack.c.bf16 %v69, %v67
  %v122 = vpack.c.bf16 %v70, %v68
  %v123 = vpack.c.bf16 %v73, %v71
  %v124 = vpack.c.bf16 %v74, %v72
  %v125 = vpack.c.bf16 %v77, %v75
  %v126 = vpack.c.bf16 %v78, %v76
  %v127 = vpack.c.bf16 %v81, %v79
  %v128 = vpack.c.bf16 %v82, %v80
  %v129 = vpack.c.bf16 %v85, %v83
  %v130 = vpack.c.bf16 %v86, %v84
  %v131 = vpack.c.bf16 %v89, %v87
  %v132 = vpack.c.bf16 %v90, %v88
  %v133 = vpack.c.bf16 %v93, %v91
  %v134 = vpack.c.bf16 %v94, %v92
  %v135 = vpack.c.bf16 %v97, %v95
  %v136 = vpack.c.bf16 %v98, %v96
  %v137 = vpack.c.bf16 %v101, %v99
  %v138 = vpack.c.bf16 %v102, %v100
  %v139 = vpack.c.bf16 %v105, %v103
  %v140 = vpack.c.bf16 %v106, %v104
  %v141 = vpack.c.bf16 %v109, %v107
  %v142 = vpack.c.bf16 %v110, %v108
  %v143 = vpack.c.bf16 %v113, %v111
  %v144 = vpack.c.bf16 %v114, %v112
  %v145 = vpack.c.bf16 %v115, %v115
  %v146 = vpack.c.bf16 %v116, %v116
  %vm147 = vcmask 850944
  %v149 = vsel %vm147, %v118, 0
  %v152 = vsel %vm147, %v120, 0
  %v155 = vsel %vm147, %v122, 0
  %v158 = vsel %vm147, %v124, 0
  %v161 = vsel %vm147, %v126, 0
  %v164 = vsel %vm147, %v128, 0
  %v167 = vsel %vm147, %v130, 0
  %v170 = vsel %vm147, %v132, 0
  %v173 = vsel %vm147, %v134, 0
  %v176 = vsel %vm147, %v136, 0
  %v179 = vsel %vm147, %v138, 0
  %v182 = vsel %vm147, %v140, 0
  %v185 = vsel %vm147, %v142, 0
  %v188 = vsel %vm147, %v144, 0
  %v191 = vsel %vm147, %v146, 0
  %vm193 = vcmask 1043456
  %v195 = vsel %vm193, %v58, 0
  %197 = vmatprep.subr.bf16.mxu0 0
  %198 = vmatpush1.bf16.msra.mxu0 %v51
  %199 = vmatprep.subr.bf16.mxu0 0
  %200 = vmatpush1.bf16.msra.mxu0 %v50
  %201 = vmatprep.subr.bf16.mxu0 0
  %202 = vmatpush1.bf16.msra.mxu0 %v49
  %203 = vmatprep.subr.bf16.mxu0 0
  %204 = vmatpush1.bf16.msra.mxu0 %v48
  %205 = vmatprep.subr.bf16.mxu0 0
  %206 = vmatpush1.bf16.msra.mxu0 %v47
  %207 = vmatprep.subr.bf16.mxu0 0
  %208 = vmatpush1.bf16.msra.mxu0 %v46
  %209 = vmatprep.subr.bf16.mxu0 0
  %210 = vmatpush1.bf16.msra.mxu0 %v45
  %211 = vmatprep.subr.bf16.mxu0 0
  %212 = vmatpush1.bf16.msra.mxu0 %v44
  %213 = vmatprep.subr.bf16.mxu0 0
  %214 = vmatpush2.bf16.msra.mxu0 0
  %215 = vmatprep.subr.bf16.mxu0 0
  %216 = vmatpush2.bf16.msra.mxu0 %v195
  %217 = vmatprep.subr.bf16.mxu0 0
  %218 = vmatpush2.bf16.msra.mxu0 %v57
  %219 = vmatprep.subr.bf16.mxu0 0
  %220 = vmatpush2.bf16.msra.mxu0 %v56
  %221 = vmatprep.subr.bf16.mxu0 0
  %222 = vmatpush2.bf16.msra.mxu0 %v55
  %223 = vmatprep.subr.bf16.mxu0 0
  %224 = vmatpush2.bf16.msra.mxu0 %v54
  %225 = vmatprep.subr.bf16.mxu0 0
  %226 = vmatpush2.bf16.msra.mxu0 %v53
  %227 = vmatprep.subr.bf16.mxu0 0
  %228 = vmatpush2.bf16.msra.mxu0 %v52
  %229 = vmatprep.mubr.bf16.mxu0 %v149
  %230 = vmatmul.mubr.bf16.gmra.mxu0 %v117
  %v231 = vpop.f32.mrf.mxu0
  %v232 = vadd.f32 0.0, %v231
  %v233 = vpop.f32.mrf.mxu0
  %v234 = vpop.f32.mrf.mxu0
  %v235 = vadd.f32 0.0, %v234
  %v236 = vpop.f32.mrf.mxu0
  %237 = vmatprep.mubr.bf16.mxu0 %v152
  %238 = vmatmul.mubr.bf16.gmra.mxu0 %v119
  %v239 = vpop.f32.mrf.mxu0
  %v240 = vadd.f32 0.0, %v239
  %v241 = vpop.f32.mrf.mxu0
  %v242 = vpop.f32.mrf.mxu0
  %v243 = vadd.f32 0.0, %v242
  %v244 = vpop.f32.mrf.mxu0
  %245 = vmatprep.mubr.bf16.mxu0 %v155
  %246 = vmatmul.mubr.bf16.gmra.mxu0 %v121
  %v247 = vpop.f32.mrf.mxu0
  %v248 = vadd.f32 0.0, %v247
  %v249 = vpop.f32.mrf.mxu0
  %v250 = vpop.f32.mrf.mxu0
  %v251 = vadd.f32 0.0, %v250
  %v252 = vpop.f32.mrf.mxu0
  %253 = vmatprep.mubr.bf16.mxu0 %v158
  %254 = vmatmul.mubr.bf16.gmra.mxu0 %v123
  %v255 = vpop.f32.mrf.mxu0
  %v256 = vadd.f32 0.0, %v255
  %v257 = vpop.f32.mrf.mxu0
  %v258 = vpop.f32.mrf.mxu0
  %v259 = vadd.f32 0.0, %v258
  %v260 = vpop.f32.mrf.mxu0
  %261 = vmatprep.mubr.bf16.mxu0 %v161
  %262 = vmatmul.mubr.bf16.gmra.mxu0 %v125
  %v263 = vpop.f32.mrf.mxu0
  %v264 = vadd.f32 0.0, %v263
  %v265 = vpop.f32.mrf.mxu0
  %v266 = vpop.f32.mrf.mxu0
  %v267 = vadd.f32 0.0, %v266
  %v268 = vpop.f32.mrf.mxu0
  %269 = vmatprep.mubr.bf16.mxu0 %v164
  %270 = vmatmul.mubr.bf16.gmra.mxu0 %v127
  %v271 = vpop.f32.mrf.mxu0
  %v272 = vadd.f32 0.0, %v271
  %v273 = vpop.f32.mrf.mxu0
  %v274 = vpop.f32.mrf.mxu0
  %v275 = vadd.f32 0.0, %v274
  %v276 = vpop.f32.mrf.mxu0
  %277 = vmatprep.mubr.bf16.mxu0 %v167
  %278 = vmatmul.mubr.bf16.gmra.mxu0 %v129
  %v279 = vpop.f32.mrf.mxu0
  %v280 = vadd.f32 0.0, %v279
  %v281 = vpop.f32.mrf.mxu0
  %v282 = vpop.f32.mrf.mxu0
  %v283 = vadd.f32 0.0, %v282
  %v284 = vpop.f32.mrf.mxu0
  %285 = vmatprep.mubr.bf16.mxu0 %v170
  %286 = vmatmul.mubr.bf16.gmra.mxu0 %v131
  %v287 = vpop.f32.mrf.mxu0
  %v288 = vadd.f32 0.0, %v287
  %v289 = vpop.f32.mrf.mxu0
  %v290 = vpop.f32.mrf.mxu0
  %v291 = vadd.f32 0.0, %v290
  %v292 = vpop.f32.mrf.mxu0
  %293 = vmatprep.mubr.bf16.mxu0 %v173
  %294 = vmatmul.mubr.bf16.gmra.mxu0 %v133
  %v295 = vpop.f32.mrf.mxu0
  %v296 = vadd.f32 0.0, %v295
  %v297 = vpop.f32.mrf.mxu0
  %v298 = vpop.f32.mrf.mxu0
  %v299 = vadd.f32 0.0, %v298
  %v300 = vpop.f32.mrf.mxu0
  %301 = vmatprep.mubr.bf16.mxu0 %v176
  %302 = vmatmul.mubr.bf16.gmra.mxu0 %v135
  %v303 = vpop.f32.mrf.mxu0
  %v304 = vadd.f32 0.0, %v303
  %v305 = vpop.f32.mrf.mxu0
  %v306 = vpop.f32.mrf.mxu0
  %v307 = vadd.f32 0.0, %v306
  %v308 = vpop.f32.mrf.mxu0
  %309 = vmatprep.mubr.bf16.mxu0 %v179
  %310 = vmatmul.mubr.bf16.gmra.mxu0 %v137
  %v311 = vpop.f32.mrf.mxu0
  %v312 = vadd.f32 0.0, %v311
  %v313 = vpop.f32.mrf.mxu0
  %v314 = vpop.f32.mrf.mxu0
  %v315 = vadd.f32 0.0, %v314
  %v316 = vpop.f32.mrf.mxu0
  %317 = vmatprep.mubr.bf16.mxu0 %v182
  %318 = vmatmul.mubr.bf16.gmra.mxu0 %v139
  %v319 = vpop.f32.mrf.mxu0
  %v320 = vadd.f32 0.0, %v319
  %v321 = vpop.f32.mrf.mxu0
  %v322 = vpop.f32.mrf.mxu0
  %v323 = vadd.f32 0.0, %v322
  %v324 = vpop.f32.mrf.mxu0
  %325 = vmatprep.mubr.bf16.mxu0 %v185
  %326 = vmatmul.mubr.bf16.gmra.mxu0 %v141
  %v327 = vpop.f32.mrf.mxu0
  %v328 = vadd.f32 0.0, %v327
  %v329 = vpop.f32.mrf.mxu0
  %v330 = vpop.f32.mrf.mxu0
  %v331 = vadd.f32 0.0, %v330
  %v332 = vpop.f32.mrf.mxu0
  %333 = vmatprep.mubr.bf16.mxu0 %v188
  %334 = vmatmul.mubr.bf16.gmra.mxu0 %v143
  %v335 = vpop.f32.mrf.mxu0
  %v336 = vadd.f32 0.0, %v335
  %v337 = vpop.f32.mrf.mxu0
  %v338 = vpop.f32.mrf.mxu0
  %v339 = vadd.f32 0.0, %v338
  %v340 = vpop.f32.mrf.mxu0
  %341 = vmatprep.mubr.bf16.mxu0 %v191
  %342 = vmatmul.mubr.bf16.gmra.mxu0 %v145
  %v343 = vpop.f32.mrf.mxu0
  %v344 = vadd.f32 0.0, %v343
  %v345 = vpop.f32.mrf.mxu0
  %v346 = vpop.f32.mrf.mxu0
  %v347 = vpop.f32.mrf.mxu0
  %348 = vdwg.mxu0
  %vm349 = vcmask 400384
  %v350 = vsel %vm349, %v232, 0.0
  %351 = vadd.xlane.f32.xlu0 %v350
  %v352 = vpop.xlane.xlu0 %351
  %v353 = vsel %vm349, %v235, 0.0
  %354 = vadd.xlane.f32.xlu0 %v353
  %v355 = vpop.xlane.xlu0 %354
  %v356 = vsel %vm349, %v240, 0.0
  %357 = vadd.xlane.f32.xlu0 %v356
  %v358 = vpop.xlane.xlu0 %357
  %v359 = vsel %vm349, %v243, 0.0
  %360 = vadd.xlane.f32.xlu0 %v359
  %v361 = vpop.xlane.xlu0 %360
  %v362 = vsel %vm349, %v248, 0.0
  %363 = vadd.xlane.f32.xlu0 %v362
  %v364 = vpop.xlane.xlu0 %363
  %v365 = vsel %vm349, %v251, 0.0
  %366 = vadd.xlane.f32.xlu0 %v365
  %v367 = vpop.xlane.xlu0 %366
  %v368 = vsel %vm349, %v256, 0.0
  %369 = vadd.xlane.f32.xlu0 %v368
  %v370 = vpop.xlane.xlu0 %369
  %v371 = vsel %vm349, %v259, 0.0
  %372 = vadd.xlane.f32.xlu0 %v371
  %v373 = vpop.xlane.xlu0 %372
  %v374 = vsel %vm349, %v264, 0.0
  %375 = vadd.xlane.f32.xlu0 %v374
  %v376 = vpop.xlane.xlu0 %375
  %v377 = vsel %vm349, %v267, 0.0
  %378 = vadd.xlane.f32.xlu0 %v377
  %v379 = vpop.xlane.xlu0 %378
  %v380 = vsel %vm349, %v272, 0.0
  %381 = vadd.xlane.f32.xlu0 %v380
  %v382 = vpop.xlane.xlu0 %381
  %v383 = vsel %vm349, %v275, 0.0
  %384 = vadd.xlane.f32.xlu0 %v383
  %v385 = vpop.xlane.xlu0 %384
  %v386 = vsel %vm349, %v280, 0.0
  %387 = vadd.xlane.f32.xlu0 %v386
  %v388 = vpop.xlane.xlu0 %387
  %v389 = vsel %vm349, %v283, 0.0
  %390 = vadd.xlane.f32.xlu0 %v389
  %v391 = vpop.xlane.xlu0 %390
  %v392 = vsel %vm349, %v288, 0.0
  %393 = vadd.xlane.f32.xlu0 %v392
  %v394 = vpop.xlane.xlu0 %393
  %v395 = vsel %vm349, %v291, 0.0
  %396 = vadd.xlane.f32.xlu0 %v395
  %v397 = vpop.xlane.xlu0 %396
  %v398 = vsel %vm349, %v296, 0.0
  %399 = vadd.xlane.f32.xlu0 %v398
  %v400 = vpop.xlane.xlu0 %399
  %v401 = vsel %vm349, %v299, 0.0
  %402 = vadd.xlane.f32.xlu0 %v401
  %v403 = vpop.xlane.xlu0 %402
  %v404 = vsel %vm349, %v304, 0.0
  %405 = vadd.xlane.f32.xlu0 %v404
  %v406 = vpop.xlane.xlu0 %405
  %v407 = vsel %vm349, %v307, 0.0
  %408 = vadd.xlane.f32.xlu0 %v407
  %v409 = vpop.xlane.xlu0 %408
  %v410 = vsel %vm349, %v312, 0.0
  %411 = vadd.xlane.f32.xlu0 %v410
  %v412 = vpop.xlane.xlu0 %411
  %v413 = vsel %vm349, %v315, 0.0
  %414 = vadd.xlane.f32.xlu0 %v413
  %v415 = vpop.xlane.xlu0 %414
  %v416 = vsel %vm349, %v320, 0.0
  %417 = vadd.xlane.f32.xlu0 %v416
  %v418 = vpop.xlane.xlu0 %417
  %v419 = vsel %vm349, %v323, 0.0
  %420 = vadd.xlane.f32.xlu0 %v419
  %v421 = vpop.xlane.xlu0 %420
  %v422 = vsel %vm349, %v328, 0.0
  %423 = vadd.xlane.f32.xlu0 %v422
  %v424 = vpop.xlane.xlu0 %423
  %v425 = vsel %vm349, %v331, 0.0
  %426 = vadd.xlane.f32.xlu0 %v425
  %v427 = vpop.xlane.xlu0 %426
  %v428 = vsel %vm349, %v336, 0.0
  %429 = vadd.xlane.f32.xlu0 %v428
  %v430 = vpop.xlane.xlu0 %429
  %v431 = vsel %vm349, %v339, 0.0
  %432 = vadd.xlane.f32.xlu0 %v431
  %v433 = vpop.xlane.xlu0 %432
  %v434 = vsel %vm349, %v344, 0.0
  %435 = vadd.xlane.f32.xlu0 %v434
  %v436 = vpop.xlane.xlu0 %435
  %v437 = vmul.f32 %v352, 0.020408163
  %v438 = vmul.f32 %v355, 0.020408163
  %v439 = vmul.f32 %v358, 0.020408163
  %v440 = vmul.f32 %v361, 0.020408163
  %v441 = vmul.f32 %v364, 0.020408163
  %v442 = vmul.f32 %v367, 0.020408163
  %v443 = vmul.f32 %v370, 0.020408163
  %v444 = vmul.f32 %v373, 0.020408163
  %v445 = vmul.f32 %v376, 0.020408163
  %v446 = vmul.f32 %v379, 0.020408163
  %v447 = vmul.f32 %v382, 0.020408163
  %v448 = vmul.f32 %v385, 0.020408163
  %v449 = vmul.f32 %v388, 0.020408163
  %v450 = vmul.f32 %v391, 0.020408163
  %v451 = vmul.f32 %v394, 0.020408163
  %v452 = vmul.f32 %v397, 0.020408163
  %v453 = vmul.f32 %v400, 0.020408163
  %v454 = vmul.f32 %v403, 0.020408163
  %v455 = vmul.f32 %v406, 0.020408163
  %v456 = vmul.f32 %v409, 0.020408163
  %v457 = vmul.f32 %v412, 0.020408163
  %v458 = vmul.f32 %v415, 0.020408163
  %v459 = vmul.f32 %v418, 0.020408163
  %v460 = vmul.f32 %v421, 0.020408163
  %v461 = vmul.f32 %v424, 0.020408163
  %v462 = vmul.f32 %v427, 0.020408163
  %v463 = vmul.f32 %v430, 0.020408163
  %v464 = vmul.f32 %v433, 0.020408163
  %v465 = vmul.f32 %v436, 0.020408163
  %v466 = vmul.f32 %v232, %v232
  %v467 = vmul.f32 %v235, %v235
  %v468 = vmul.f32 %v240, %v240
  %v469 = vmul.f32 %v243, %v243
  %v470 = vmul.f32 %v248, %v248
  %v471 = vmul.f32 %v251, %v251
  %v472 = vmul.f32 %v256, %v256
  %v473 = vmul.f32 %v259, %v259
  %v474 = vmul.f32 %v264, %v264
  %v475 = vmul.f32 %v267, %v267
  %v476 = vmul.f32 %v272, %v272
  %v477 = vmul.f32 %v275, %v275
  %v478 = vmul.f32 %v280, %v280
  %v479 = vmul.f32 %v283, %v283
  %v480 = vmul.f32 %v288, %v288
  %v481 = vmul.f32 %v291, %v291
  %v482 = vmul.f32 %v296, %v296
  %v483 = vmul.f32 %v299, %v299
  %v484 = vmul.f32 %v304, %v304
  %v485 = vmul.f32 %v307, %v307
  %v486 = vmul.f32 %v312, %v312
  %v487 = vmul.f32 %v315, %v315
  %v488 = vmul.f32 %v320, %v320
  %v489 = vmul.f32 %v323, %v323
  %v490 = vmul.f32 %v328, %v328
  %v491 = vmul.f32 %v331, %v331
  %v492 = vmul.f32 %v336, %v336
  %v493 = vmul.f32 %v339, %v339
  %v494 = vmul.f32 %v344, %v344
  %v495 = vsel %vm349, %v466, 0.0
  %496 = vadd.xlane.f32.xlu0 %v495
  %v497 = vpop.xlane.xlu0 %496
  %v498 = vsel %vm349, %v467, 0.0
  %499 = vadd.xlane.f32.xlu0 %v498
  %v500 = vpop.xlane.xlu0 %499
  %v501 = vsel %vm349, %v468, 0.0
  %502 = vadd.xlane.f32.xlu0 %v501
  %v503 = vpop.xlane.xlu0 %502
  %v504 = vsel %vm349, %v469, 0.0
  %505 = vadd.xlane.f32.xlu0 %v504
  %v506 = vpop.xlane.xlu0 %505
  %v507 = vsel %vm349, %v470, 0.0
  %508 = vadd.xlane.f32.xlu0 %v507
  %v509 = vpop.xlane.xlu0 %508
  %v510 = vsel %vm349, %v471, 0.0
  %511 = vadd.xlane.f32.xlu0 %v510
  %v512 = vpop.xlane.xlu0 %511
  %v513 = vsel %vm349, %v472, 0.0
  %514 = vadd.xlane.f32.xlu0 %v513
  %v515 = vpop.xlane.xlu0 %514
  %v516 = vsel %vm349, %v473, 0.0
  %517 = vadd.xlane.f32.xlu0 %v516
  %v518 = vpop.xlane.xlu0 %517
  %v519 = vsel %vm349, %v474, 0.0
  %520 = vadd.xlane.f32.xlu0 %v519
  %v521 = vpop.xlane.xlu0 %520
  %v522 = vsel %vm349, %v475, 0.0
  %523 = vadd.xlane.f32.xlu0 %v522
  %v524 = vpop.xlane.xlu0 %523
  %v525 = vsel %vm349, %v476, 0.0
  %526 = vadd.xlane.f32.xlu0 %v525
  %v527 = vpop.xlane.xlu0 %526
  %v528 = vsel %vm349, %v477, 0.0
  %529 = vadd.xlane.f32.xlu0 %v528
  %v530 = vpop.xlane.xlu0 %529
  %v531 = vsel %vm349, %v478, 0.0
  %532 = vadd.xlane.f32.xlu0 %v531
  %v533 = vpop.xlane.xlu0 %532
  %v534 = vsel %vm349, %v479, 0.0
  %535 = vadd.xlane.f32.xlu0 %v534
  %v536 = vpop.xlane.xlu0 %535
  %v537 = vsel %vm349, %v480, 0.0
  %538 = vadd.xlane.f32.xlu0 %v537
  %v539 = vpop.xlane.xlu0 %538
  %v540 = vsel %vm349, %v481, 0.0
  %541 = vadd.xlane.f32.xlu0 %v540
  %v542 = vpop.xlane.xlu0 %541
  %v543 = vsel %vm349, %v482, 0.0
  %544 = vadd.xlane.f32.xlu0 %v543
  %v545 = vpop.xlane.xlu0 %544
  %v546 = vsel %vm349, %v483, 0.0
  %547 = vadd.xlane.f32.xlu0 %v546
  %v548 = vpop.xlane.xlu0 %547
  %v549 = vsel %vm349, %v484, 0.0
  %550 = vadd.xlane.f32.xlu0 %v549
  %v551 = vpop.xlane.xlu0 %550
  %v552 = vsel %vm349, %v485, 0.0
  %553 = vadd.xlane.f32.xlu0 %v552
  %v554 = vpop.xlane.xlu0 %553
  %v555 = vsel %vm349, %v486, 0.0
  %556 = vadd.xlane.f32.xlu0 %v555
  %v557 = vpop.xlane.xlu0 %556
  %v558 = vsel %vm349, %v487, 0.0
  %559 = vadd.xlane.f32.xlu0 %v558
  %v560 = vpop.xlane.xlu0 %559
  %v561 = vsel %vm349, %v488, 0.0
  %562 = vadd.xlane.f32.xlu0 %v561
  %v563 = vpop.xlane.xlu0 %562
  %v564 = vsel %vm349, %v489, 0.0
  %565 = vadd.xlane.f32.xlu0 %v564
  %v566 = vpop.xlane.xlu0 %565
  %v567 = vsel %vm349, %v490, 0.0
  %568 = vadd.xlane.f32.xlu0 %v567
  %v569 = vpop.xlane.xlu0 %568
  %v570 = vsel %vm349, %v491, 0.0
  %571 = vadd.xlane.f32.xlu0 %v570
  %v572 = vpop.xlane.xlu0 %571
  %v573 = vsel %vm349, %v492, 0.0
  %574 = vadd.xlane.f32.xlu0 %v573
  %v575 = vpop.xlane.xlu0 %574
  %v576 = vsel %vm349, %v493, 0.0
  %577 = vadd.xlane.f32.xlu0 %v576
  %v578 = vpop.xlane.xlu0 %577
  %v579 = vsel %vm349, %v494, 0.0
  %580 = vadd.xlane.f32.xlu0 %v579
  %v581 = vpop.xlane.xlu0 %580
  %v582 = vmul.f32 %v497, 0.020408163
  %v583 = vmul.f32 %v500, 0.020408163
  %v584 = vmul.f32 %v503, 0.020408163
  %v585 = vmul.f32 %v506, 0.020408163
  %v586 = vmul.f32 %v509, 0.020408163
  %v587 = vmul.f32 %v512, 0.020408163
  %v588 = vmul.f32 %v515, 0.020408163
  %v589 = vmul.f32 %v518, 0.020408163
  %v590 = vmul.f32 %v521, 0.020408163
  %v591 = vmul.f32 %v524, 0.020408163
  %v592 = vmul.f32 %v527, 0.020408163
  %v593 = vmul.f32 %v530, 0.020408163
  %v594 = vmul.f32 %v533, 0.020408163
  %v595 = vmul.f32 %v536, 0.020408163
  %v596 = vmul.f32 %v539, 0.020408163
  %v597 = vmul.f32 %v542, 0.020408163
  %v598 = vmul.f32 %v545, 0.020408163
  %v599 = vmul.f32 %v548, 0.020408163
  %v600 = vmul.f32 %v551, 0.020408163
  %v601 = vmul.f32 %v554, 0.020408163
  %v602 = vmul.f32 %v557, 0.020408163
  %v603 = vmul.f32 %v560, 0.020408163
  %v604 = vmul.f32 %v563, 0.020408163
  %v605 = vmul.f32 %v566, 0.020408163
  %v606 = vmul.f32 %v569, 0.020408163
  %v607 = vmul.f32 %v572, 0.020408163
  %v608 = vmul.f32 %v575, 0.020408163
  %v609 = vmul.f32 %v578, 0.020408163
  %v610 = vmul.f32 %v581, 0.020408163
  %v611 = vmul.f32 %v437, %v437
  %v612 = vmul.f32 %v438, %v438
  %v613 = vmul.f32 %v439, %v439
  %v614 = vmul.f32 %v440, %v440
  %v615 = vmul.f32 %v441, %v441
  %v616 = vmul.f32 %v442, %v442
  %v617 = vmul.f32 %v443, %v443
  %v618 = vmul.f32 %v444, %v444
  %v619 = vmul.f32 %v445, %v445
  %v620 = vmul.f32 %v446, %v446
  %v621 = vmul.f32 %v447, %v447
  %v622 = vmul.f32 %v448, %v448
  %v623 = vmul.f32 %v449, %v449
  %v624 = vmul.f32 %v450, %v450
  %v625 = vmul.f32 %v451, %v451
  %v626 = vmul.f32 %v452, %v452
  %v627 = vmul.f32 %v453, %v453
  %v628 = vmul.f32 %v454, %v454
  %v629 = vmul.f32 %v455, %v455
  %v630 = vmul.f32 %v456, %v456
  %v631 = vmul.f32 %v457, %v457
  %v632 = vmul.f32 %v458, %v458
  %v633 = vmul.f32 %v459, %v459
  %v634 = vmul.f32 %v460, %v460
  %v635 = vmul.f32 %v461, %v461
  %v636 = vmul.f32 %v462, %v462
  %v637 = vmul.f32 %v463, %v463
  %v638 = vmul.f32 %v464, %v464
  %v639 = vmul.f32 %v465, %v465
  %v640 = vsub.f32 %v582, %v611
  %v641 = vsub.f32 %v583, %v612
  %v642 = vsub.f32 %v584, %v613
  %v643 = vsub.f32 %v585, %v614
  %v644 = vsub.f32 %v586, %v615
  %v645 = vsub.f32 %v587, %v616
  %v646 = vsub.f32 %v588, %v617
  %v647 = vsub.f32 %v589, %v618
  %v648 = vsub.f32 %v590, %v619
  %v649 = vsub.f32 %v591, %v620
  %v650 = vsub.f32 %v592, %v621
  %v651 = vsub.f32 %v593, %v622
  %v652 = vsub.f32 %v594, %v623
  %v653 = vsub.f32 %v595, %v624
  %v654 = vsub.f32 %v596, %v625
  %v655 = vsub.f32 %v597, %v626
  %v656 = vsub.f32 %v598, %v627
  %v657 = vsub.f32 %v599, %v628
  %v658 = vsub.f32 %v600, %v629
  %v659 = vsub.f32 %v601, %v630
  %v660 = vsub.f32 %v602, %v631
  %v661 = vsub.f32 %v603, %v632
  %v662 = vsub.f32 %v604, %v633
  %v663 = vsub.f32 %v605, %v634
  %v664 = vsub.f32 %v606, %v635
  %v665 = vsub.f32 %v607, %v636
  %v666 = vsub.f32 %v608, %v637
  %v667 = vsub.f32 %v609, %v638
  %v668 = vsub.f32 %v610, %v639
  %v669 = vmax.f32 %v640, 0.0
  %v670 = vmax.f32 %v641, 0.0
  %v671 = vmax.f32 %v642, 0.0
  %v672 = vmax.f32 %v643, 0.0
  %v673 = vmax.f32 %v644, 0.0
  %v674 = vmax.f32 %v645, 0.0
  %v675 = vmax.f32 %v646, 0.0
  %v676 = vmax.f32 %v647, 0.0
  %v677 = vmax.f32 %v648, 0.0
  %v678 = vmax.f32 %v649, 0.0
  %v679 = vmax.f32 %v650, 0.0
  %v680 = vmax.f32 %v651, 0.0
  %v681 = vmax.f32 %v652, 0.0
  %v682 = vmax.f32 %v653, 0.0
  %v683 = vmax.f32 %v654, 0.0
  %v684 = vmax.f32 %v655, 0.0
  %v685 = vmax.f32 %v656, 0.0
  %v686 = vmax.f32 %v657, 0.0
  %v687 = vmax.f32 %v658, 0.0
  %v688 = vmax.f32 %v659, 0.0
  %v689 = vmax.f32 %v660, 0.0
  %v690 = vmax.f32 %v661, 0.0
  %v691 = vmax.f32 %v662, 0.0
  %v692 = vmax.f32 %v663, 0.0
  %v693 = vmax.f32 %v664, 0.0
  %v694 = vmax.f32 %v665, 0.0
  %v695 = vmax.f32 %v666, 0.0
  %v696 = vmax.f32 %v667, 0.0
  %v697 = vmax.f32 %v668, 0.0
  %v698 = vadd.f32 %v669, 1e-05
  %v699 = vadd.f32 %v670, 1e-05
  %v700 = vadd.f32 %v671, 1e-05
  %v701 = vadd.f32 %v672, 1e-05
  %v702 = vadd.f32 %v673, 1e-05
  %v703 = vadd.f32 %v674, 1e-05
  %v704 = vadd.f32 %v675, 1e-05
  %v705 = vadd.f32 %v676, 1e-05
  %v706 = vadd.f32 %v677, 1e-05
  %v707 = vadd.f32 %v678, 1e-05
  %v708 = vadd.f32 %v679, 1e-05
  %v709 = vadd.f32 %v680, 1e-05
  %v710 = vadd.f32 %v681, 1e-05
  %v711 = vadd.f32 %v682, 1e-05
  %v712 = vadd.f32 %v683, 1e-05
  %v713 = vadd.f32 %v684, 1e-05
  %v714 = vadd.f32 %v685, 1e-05
  %v715 = vadd.f32 %v686, 1e-05
  %v716 = vadd.f32 %v687, 1e-05
  %v717 = vadd.f32 %v688, 1e-05
  %v718 = vadd.f32 %v689, 1e-05
  %v719 = vadd.f32 %v690, 1e-05
  %v720 = vadd.f32 %v691, 1e-05
  %v721 = vadd.f32 %v692, 1e-05
  %v722 = vadd.f32 %v693, 1e-05
  %v723 = vadd.f32 %v694, 1e-05
  %v724 = vadd.f32 %v695, 1e-05
  %v725 = vadd.f32 %v696, 1e-05
  %v726 = vadd.f32 %v697, 1e-05
  %v727 = vrsqrt.pop %v698
  %v728 = vrsqrt.pop %v699
  %v729 = vrsqrt.pop %v700
  %v730 = vrsqrt.pop %v701
  %v731 = vrsqrt.pop %v702
  %v732 = vrsqrt.pop %v703
  %v733 = vrsqrt.pop %v704
  %v734 = vrsqrt.pop %v705
  %v735 = vrsqrt.pop %v706
  %v736 = vrsqrt.pop %v707
  %v737 = vrsqrt.pop %v708
  %v738 = vrsqrt.pop %v709
  %v739 = vrsqrt.pop %v710
  %v740 = vrsqrt.pop %v711
  %v741 = vrsqrt.pop %v712
  %v742 = vrsqrt.pop %v713
  %v743 = vrsqrt.pop %v714
  %v744 = vrsqrt.pop %v715
  %v745 = vrsqrt.pop %v716
  %v746 = vrsqrt.pop %v717
  %v747 = vrsqrt.pop %v718
  %v748 = vrsqrt.pop %v719
  %v749 = vrsqrt.pop %v720
  %v750 = vrsqrt.pop %v721
  %v751 = vrsqrt.pop %v722
  %v752 = vrsqrt.pop %v723
  %v753 = vrsqrt.pop %v724
  %v754 = vrsqrt.pop %v725
  %v755 = vrsqrt.pop %v726
  %v756 = vld [vmem:[%s2] sm:$0xff]
  %v757 = vld [vmem:[%s2 + $0x8] sm:$0xff]
  %v758 = vld [vmem:[%s2 + $0x10] sm:$0xff]
  %v759 = vld [vmem:[%s2 + $0x18] sm:$0xff]
  %v760 = vld [vmem:[%s2 + $0x20] sm:$0xff]
  %v761 = vld [vmem:[%s2 + $0x28] sm:$0xff]
  %v762 = vld [vmem:[%s2 + $0x30] sm:$0xff]
  %v763 = vld [vmem:[%s2 + $0x38] sm:$0xff]
  %v764 = vld [vmem:[%s2 + $0x40] sm:$0xff]
  %v765 = vld [vmem:[%s2 + $0x48] sm:$0xff]
  %v766 = vld [vmem:[%s2 + $0x50] sm:$0xff]
  %v767 = vld [vmem:[%s2 + $0x58] sm:$0xff]
  %v768 = vld [vmem:[%s2 + $0x60] sm:$0xff]
  %v769 = vld [vmem:[%s2 + $0x68] sm:$0xff]
  %v770 = vld [vmem:[%s2 + $0x70] sm:$0xff]
  %v771 = vld [vmem:[%s2 + $0x78] sm:$0xff]
  %v772 = vld [vmem:[%s2 + $0x80] sm:$0xff]
  %v773 = vld [vmem:[%s2 + $0x88] sm:$0xff]
  %v774 = vld [vmem:[%s2 + $0x90] sm:$0xff]
  %v775 = vld [vmem:[%s2 + $0x98] sm:$0xff]
  %v776 = vld [vmem:[%s2 + $0xa0] sm:$0xff]
  %v777 = vld [vmem:[%s2 + $0xa8] sm:$0xff]
  %v778 = vld [vmem:[%s2 + $0xb0] sm:$0xff]
  %v779 = vld [vmem:[%s2 + $0xb8] sm:$0xff]
  %v780 = vld [vmem:[%s2 + $0xc0] sm:$0xff]
  %v781 = vld [vmem:[%s2 + $0xc8] sm:$0xff]
  %v782 = vld [vmem:[%s2 + $0xd0] sm:$0xff]
  %v783 = vld [vmem:[%s2 + $0xd8] sm:$0xff]
  %v784 = vld [vmem:[%s2 + $0xe0] sm:$0xff]
  %v785 = vmul.f32 %v756, %v727
  %v786 = vmul.f32 %v757, %v728
  %v787 = vmul.f32 %v758, %v729
  %v788 = vmul.f32 %v759, %v730
  %v789 = vmul.f32 %v760, %v731
  %v790 = vmul.f32 %v761, %v732
  %v791 = vmul.f32 %v762, %v733
  %v792 = vmul.f32 %v763, %v734
  %v793 = vmul.f32 %v764, %v735
  %v794 = vmul.f32 %v765, %v736
  %v795 = vmul.f32 %v766, %v737
  %v796 = vmul.f32 %v767, %v738
  %v797 = vmul.f32 %v768, %v739
  %v798 = vmul.f32 %v769, %v740
  %v799 = vmul.f32 %v770, %v741
  %v800 = vmul.f32 %v771, %v742
  %v801 = vmul.f32 %v772, %v743
  %v802 = vmul.f32 %v773, %v744
  %v803 = vmul.f32 %v774, %v745
  %v804 = vmul.f32 %v775, %v746
  %v805 = vmul.f32 %v776, %v747
  %v806 = vmul.f32 %v777, %v748
  %v807 = vmul.f32 %v778, %v749
  %v808 = vmul.f32 %v779, %v750
  %v809 = vmul.f32 %v780, %v751
  %v810 = vmul.f32 %v781, %v752
  %v811 = vmul.f32 %v782, %v753
  %v812 = vmul.f32 %v783, %v754
  %v813 = vmul.f32 %v784, %v755
  %v814 = vmul.f32 %v437, %v785
  %v815 = vmul.f32 %v438, %v786
  %v816 = vmul.f32 %v439, %v787
  %v817 = vmul.f32 %v440, %v788
  %v818 = vmul.f32 %v441, %v789
  %v819 = vmul.f32 %v442, %v790
  %v820 = vmul.f32 %v443, %v791
  %v821 = vmul.f32 %v444, %v792
  %v822 = vmul.f32 %v445, %v793
  %v823 = vmul.f32 %v446, %v794
  %v824 = vmul.f32 %v447, %v795
  %v825 = vmul.f32 %v448, %v796
  %v826 = vmul.f32 %v449, %v797
  %v827 = vmul.f32 %v450, %v798
  %v828 = vmul.f32 %v451, %v799
  %v829 = vmul.f32 %v452, %v800
  %v830 = vmul.f32 %v453, %v801
  %v831 = vmul.f32 %v454, %v802
  %v832 = vmul.f32 %v455, %v803
  %v833 = vmul.f32 %v456, %v804
  %v834 = vmul.f32 %v457, %v805
  %v835 = vmul.f32 %v458, %v806
  %v836 = vmul.f32 %v459, %v807
  %v837 = vmul.f32 %v460, %v808
  %v838 = vmul.f32 %v461, %v809
  %v839 = vmul.f32 %v462, %v810
  %v840 = vmul.f32 %v463, %v811
  %v841 = vmul.f32 %v464, %v812
  %v842 = vmul.f32 %v465, %v813
  %872 = vrot.lane.b32.xlu0 %v814, 1
  %v873 = vpop.permute.xlu0 %872
  %874 = vrot.lane.b32.xlu0 %v815, 1
  %v875 = vpop.permute.xlu0 %874
  %876 = vrot.lane.b32.xlu0 %v816, 1
  %v877 = vpop.permute.xlu0 %876
  %878 = vrot.lane.b32.xlu0 %v817, 1
  %v879 = vpop.permute.xlu0 %878
  %880 = vrot.lane.b32.xlu0 %v818, 1
  %v881 = vpop.permute.xlu0 %880
  %882 = vrot.lane.b32.xlu0 %v819, 1
  %v883 = vpop.permute.xlu0 %882
  %884 = vrot.lane.b32.xlu0 %v820, 1
  %v885 = vpop.permute.xlu0 %884
  %886 = vrot.lane.b32.xlu0 %v821, 1
  %v887 = vpop.permute.xlu0 %886
  %888 = vrot.lane.b32.xlu0 %v822, 1
  %v889 = vpop.permute.xlu0 %888
  %890 = vrot.lane.b32.xlu0 %v823, 1
  %v891 = vpop.permute.xlu0 %890
  %892 = vrot.lane.b32.xlu0 %v824, 1
  %v893 = vpop.permute.xlu0 %892
  %894 = vrot.lane.b32.xlu0 %v825, 1
  %v895 = vpop.permute.xlu0 %894
  %896 = vrot.lane.b32.xlu0 %v826, 1
  %v897 = vpop.permute.xlu0 %896
  %898 = vrot.lane.b32.xlu0 %v827, 1
  %v899 = vpop.permute.xlu0 %898
  %900 = vrot.lane.b32.xlu0 %v828, 1
  %v901 = vpop.permute.xlu0 %900
  %902 = vrot.lane.b32.xlu0 %v829, 1
  %v903 = vpop.permute.xlu0 %902
  %904 = vrot.lane.b32.xlu0 %v830, 1
  %v905 = vpop.permute.xlu0 %904
  %906 = vrot.lane.b32.xlu0 %v831, 1
  %v907 = vpop.permute.xlu0 %906
  %908 = vrot.lane.b32.xlu0 %v832, 1
  %v909 = vpop.permute.xlu0 %908
  %910 = vrot.lane.b32.xlu0 %v833, 1
  %v911 = vpop.permute.xlu0 %910
  %912 = vrot.lane.b32.xlu0 %v834, 1
  %v913 = vpop.permute.xlu0 %912
  %914 = vrot.lane.b32.xlu0 %v835, 1
  %v915 = vpop.permute.xlu0 %914
  %916 = vrot.lane.b32.xlu0 %v836, 1
  %v917 = vpop.permute.xlu0 %916
  %918 = vrot.lane.b32.xlu0 %v837, 1
  %v919 = vpop.permute.xlu0 %918
  %920 = vrot.lane.b32.xlu0 %v838, 1
  %v921 = vpop.permute.xlu0 %920
  %922 = vrot.lane.b32.xlu0 %v839, 1
  %v923 = vpop.permute.xlu0 %922
  %924 = vrot.lane.b32.xlu0 %v840, 1
  %v925 = vpop.permute.xlu0 %924
  %926 = vrot.lane.b32.xlu0 %v841, 1
  %v927 = vpop.permute.xlu0 %926
  %928 = vrot.lane.b32.xlu0 %v842, 1
  %v929 = vpop.permute.xlu0 %928
  %v959 = vsub.f32 %v756, %v873
  %v960 = vsub.f32 %v757, %v875
  %v961 = vsub.f32 %v758, %v877
  %v962 = vsub.f32 %v759, %v879
  %v963 = vsub.f32 %v760, %v881
  %v964 = vsub.f32 %v761, %v883
  %v965 = vsub.f32 %v762, %v885
  %v966 = vsub.f32 %v763, %v887
  %v967 = vsub.f32 %v764, %v889
  %v968 = vsub.f32 %v765, %v891
  %v969 = vsub.f32 %v766, %v893
  %v970 = vsub.f32 %v767, %v895
  %v971 = vsub.f32 %v768, %v897
  %v972 = vsub.f32 %v769, %v899
  %v973 = vsub.f32 %v770, %v901
  %v974 = vsub.f32 %v771, %v903
  %v975 = vsub.f32 %v772, %v905
  %v976 = vsub.f32 %v773, %v907
  %v977 = vsub.f32 %v774, %v909
  %v978 = vsub.f32 %v775, %v911
  %v979 = vsub.f32 %v776, %v913
  %v980 = vsub.f32 %v777, %v915
  %v981 = vsub.f32 %v778, %v917
  %v982 = vsub.f32 %v779, %v919
  %v983 = vsub.f32 %v780, %v921
  %v984 = vsub.f32 %v781, %v923
  %v985 = vsub.f32 %v782, %v925
  %v986 = vsub.f32 %v783, %v927
  %v987 = vsub.f32 %v784, %v929
  %989 = vset.pattern.permute.xlu0 0
  %990 = vperm.xlu0 %989, %v785
  %v991 = vpop.permute.xlu0 %990
  %994 = vset.pattern.permute.xlu0 0
  %995 = vperm.xlu0 %994, %v786
  %v996 = vpop.permute.xlu0 %995
  %999 = vset.pattern.permute.xlu0 0
  %1000 = vperm.xlu0 %999, %v787
  %v1001 = vpop.permute.xlu0 %1000
  %1004 = vset.pattern.permute.xlu0 0
  %1005 = vperm.xlu0 %1004, %v788
  %v1006 = vpop.permute.xlu0 %1005
  %1009 = vset.pattern.permute.xlu0 0
  %1010 = vperm.xlu0 %1009, %v789
  %v1011 = vpop.permute.xlu0 %1010
  %1014 = vset.pattern.permute.xlu0 0
  %1015 = vperm.xlu0 %1014, %v790
  %v1016 = vpop.permute.xlu0 %1015
  %1019 = vset.pattern.permute.xlu0 0
  %1020 = vperm.xlu0 %1019, %v791
  %v1021 = vpop.permute.xlu0 %1020
  %1024 = vset.pattern.permute.xlu0 0
  %1025 = vperm.xlu0 %1024, %v792
  %v1026 = vpop.permute.xlu0 %1025
  %1029 = vset.pattern.permute.xlu0 0
  %1030 = vperm.xlu0 %1029, %v793
  %v1031 = vpop.permute.xlu0 %1030
  %1034 = vset.pattern.permute.xlu0 0
  %1035 = vperm.xlu0 %1034, %v794
  %v1036 = vpop.permute.xlu0 %1035
  %1039 = vset.pattern.permute.xlu0 0
  %1040 = vperm.xlu0 %1039, %v795
  %v1041 = vpop.permute.xlu0 %1040
  %1044 = vset.pattern.permute.xlu0 0
  %1045 = vperm.xlu0 %1044, %v796
  %v1046 = vpop.permute.xlu0 %1045
  %1049 = vset.pattern.permute.xlu0 0
  %1050 = vperm.xlu0 %1049, %v797
  %v1051 = vpop.permute.xlu0 %1050
  %1054 = vset.pattern.permute.xlu0 0
  %1055 = vperm.xlu0 %1054, %v798
  %v1056 = vpop.permute.xlu0 %1055
  %1059 = vset.pattern.permute.xlu0 0
  %1060 = vperm.xlu0 %1059, %v799
  %v1061 = vpop.permute.xlu0 %1060
  %1064 = vset.pattern.permute.xlu0 0
  %1065 = vperm.xlu0 %1064, %v800
  %v1066 = vpop.permute.xlu0 %1065
  %1069 = vset.pattern.permute.xlu0 0
  %1070 = vperm.xlu0 %1069, %v801
  %v1071 = vpop.permute.xlu0 %1070
  %1074 = vset.pattern.permute.xlu0 0
  %1075 = vperm.xlu0 %1074, %v802
  %v1076 = vpop.permute.xlu0 %1075
  %1079 = vset.pattern.permute.xlu0 0
  %1080 = vperm.xlu0 %1079, %v803
  %v1081 = vpop.permute.xlu0 %1080
  %1084 = vset.pattern.permute.xlu0 0
  %1085 = vperm.xlu0 %1084, %v804
  %v1086 = vpop.permute.xlu0 %1085
  %1089 = vset.pattern.permute.xlu0 0
  %1090 = vperm.xlu0 %1089, %v805
  %v1091 = vpop.permute.xlu0 %1090
  %1094 = vset.pattern.permute.xlu0 0
  %1095 = vperm.xlu0 %1094, %v806
  %v1096 = vpop.permute.xlu0 %1095
  %1099 = vset.pattern.permute.xlu0 0
  %1100 = vperm.xlu0 %1099, %v807
  %v1101 = vpop.permute.xlu0 %1100
  %1104 = vset.pattern.permute.xlu0 0
  %1105 = vperm.xlu0 %1104, %v808
  %v1106 = vpop.permute.xlu0 %1105
  %1109 = vset.pattern.permute.xlu0 0
  %1110 = vperm.xlu0 %1109, %v809
  %v1111 = vpop.permute.xlu0 %1110
  %1114 = vset.pattern.permute.xlu0 0
  %1115 = vperm.xlu0 %1114, %v810
  %v1116 = vpop.permute.xlu0 %1115
  %1119 = vset.pattern.permute.xlu0 0
  %1120 = vperm.xlu0 %1119, %v811
  %v1121 = vpop.permute.xlu0 %1120
  %1124 = vset.pattern.permute.xlu0 0
  %1125 = vperm.xlu0 %1124, %v812
  %v1126 = vpop.permute.xlu0 %1125
  %1129 = vset.pattern.permute.xlu0 0
  %1130 = vperm.xlu0 %1129, %v813
  %v1131 = vpop.permute.xlu0 %1130
  %v1133 = vmul.f32 %v232, %v991
  %v1134 = vmul.f32 %v235, %v996
  %v1135 = vmul.f32 %v240, %v1001
  %v1136 = vmul.f32 %v243, %v1006
  %v1137 = vmul.f32 %v248, %v1011
  %v1138 = vmul.f32 %v251, %v1016
  %v1139 = vmul.f32 %v256, %v1021
  %v1140 = vmul.f32 %v259, %v1026
  %v1141 = vmul.f32 %v264, %v1031
  %v1142 = vmul.f32 %v267, %v1036
  %v1143 = vmul.f32 %v272, %v1041
  %v1144 = vmul.f32 %v275, %v1046
  %v1145 = vmul.f32 %v280, %v1051
  %v1146 = vmul.f32 %v283, %v1056
  %v1147 = vmul.f32 %v288, %v1061
  %v1148 = vmul.f32 %v291, %v1066
  %v1149 = vmul.f32 %v296, %v1071
  %v1150 = vmul.f32 %v299, %v1076
  %v1151 = vmul.f32 %v304, %v1081
  %v1152 = vmul.f32 %v307, %v1086
  %v1153 = vmul.f32 %v312, %v1091
  %v1154 = vmul.f32 %v315, %v1096
  %v1155 = vmul.f32 %v320, %v1101
  %v1156 = vmul.f32 %v323, %v1106
  %v1157 = vmul.f32 %v328, %v1111
  %v1158 = vmul.f32 %v331, %v1116
  %v1159 = vmul.f32 %v336, %v1121
  %v1160 = vmul.f32 %v339, %v1126
  %v1161 = vmul.f32 %v344, %v1131
  %1163 = vset.pattern.permute.xlu0 1
  %1164 = vperm.xlu0 %1163, %v959
  %v1165 = vpop.permute.xlu0 %1164
  %1168 = vset.pattern.permute.xlu0 1
  %1169 = vperm.xlu0 %1168, %v960
  %v1170 = vpop.permute.xlu0 %1169
  %1173 = vset.pattern.permute.xlu0 1
  %1174 = vperm.xlu0 %1173, %v961
  %v1175 = vpop.permute.xlu0 %1174
  %1178 = vset.pattern.permute.xlu0 1
  %1179 = vperm.xlu0 %1178, %v962
  %v1180 = vpop.permute.xlu0 %1179
  %1183 = vset.pattern.permute.xlu0 1
  %1184 = vperm.xlu0 %1183, %v963
  %v1185 = vpop.permute.xlu0 %1184
  %1188 = vset.pattern.permute.xlu0 1
  %1189 = vperm.xlu0 %1188, %v964
  %v1190 = vpop.permute.xlu0 %1189
  %1193 = vset.pattern.permute.xlu0 1
  %1194 = vperm.xlu0 %1193, %v965
  %v1195 = vpop.permute.xlu0 %1194
  %1198 = vset.pattern.permute.xlu0 1
  %1199 = vperm.xlu0 %1198, %v966
  %v1200 = vpop.permute.xlu0 %1199
  %1203 = vset.pattern.permute.xlu0 1
  %1204 = vperm.xlu0 %1203, %v967
  %v1205 = vpop.permute.xlu0 %1204
  %1208 = vset.pattern.permute.xlu0 1
  %1209 = vperm.xlu0 %1208, %v968
  %v1210 = vpop.permute.xlu0 %1209
  %1213 = vset.pattern.permute.xlu0 1
  %1214 = vperm.xlu0 %1213, %v969
  %v1215 = vpop.permute.xlu0 %1214
  %1218 = vset.pattern.permute.xlu0 1
  %1219 = vperm.xlu0 %1218, %v970
  %v1220 = vpop.permute.xlu0 %1219
  %1223 = vset.pattern.permute.xlu0 1
  %1224 = vperm.xlu0 %1223, %v971
  %v1225 = vpop.permute.xlu0 %1224
  %1228 = vset.pattern.permute.xlu0 1
  %1229 = vperm.xlu0 %1228, %v972
  %v1230 = vpop.permute.xlu0 %1229
  %1233 = vset.pattern.permute.xlu0 1
  %1234 = vperm.xlu0 %1233, %v973
  %v1235 = vpop.permute.xlu0 %1234
  %1238 = vset.pattern.permute.xlu0 1
  %1239 = vperm.xlu0 %1238, %v974
  %v1240 = vpop.permute.xlu0 %1239
  %1243 = vset.pattern.permute.xlu0 1
  %1244 = vperm.xlu0 %1243, %v975
  %v1245 = vpop.permute.xlu0 %1244
  %1248 = vset.pattern.permute.xlu0 1
  %1249 = vperm.xlu0 %1248, %v976
  %v1250 = vpop.permute.xlu0 %1249
  %1253 = vset.pattern.permute.xlu0 1
  %1254 = vperm.xlu0 %1253, %v977
  %v1255 = vpop.permute.xlu0 %1254
  %1258 = vset.pattern.permute.xlu0 1
  %1259 = vperm.xlu0 %1258, %v978
  %v1260 = vpop.permute.xlu0 %1259
  %1263 = vset.pattern.permute.xlu0 1
  %1264 = vperm.xlu0 %1263, %v979
  %v1265 = vpop.permute.xlu0 %1264
  %1268 = vset.pattern.permute.xlu0 1
  %1269 = vperm.xlu0 %1268, %v980
  %v1270 = vpop.permute.xlu0 %1269
  %1273 = vset.pattern.permute.xlu0 1
  %1274 = vperm.xlu0 %1273, %v981
  %v1275 = vpop.permute.xlu0 %1274
  %1278 = vset.pattern.permute.xlu0 1
  %1279 = vperm.xlu0 %1278, %v982
  %v1280 = vpop.permute.xlu0 %1279
  %1283 = vset.pattern.permute.xlu0 1
  %1284 = vperm.xlu0 %1283, %v983
  %v1285 = vpop.permute.xlu0 %1284
  %1288 = vset.pattern.permute.xlu0 1
  %1289 = vperm.xlu0 %1288, %v984
  %v1290 = vpop.permute.xlu0 %1289
  %1293 = vset.pattern.permute.xlu0 1
  %1294 = vperm.xlu0 %1293, %v985
  %v1295 = vpop.permute.xlu0 %1294
  %1298 = vset.pattern.permute.xlu0 1
  %1299 = vperm.xlu0 %1298, %v986
  %v1300 = vpop.permute.xlu0 %1299
  %1303 = vset.pattern.permute.xlu0 1
  %1304 = vperm.xlu0 %1303, %v987
  %v1305 = vpop.permute.xlu0 %1304
  %v1307 = vadd.f32 %v1133, %v1165
  %v1308 = vadd.f32 %v1134, %v1170
  %v1309 = vadd.f32 %v1135, %v1175
  %v1310 = vadd.f32 %v1136, %v1180
  %v1311 = vadd.f32 %v1137, %v1185
  %v1312 = vadd.f32 %v1138, %v1190
  %v1313 = vadd.f32 %v1139, %v1195
  %v1314 = vadd.f32 %v1140, %v1200
  %v1315 = vadd.f32 %v1141, %v1205
  %v1316 = vadd.f32 %v1142, %v1210
  %v1317 = vadd.f32 %v1143, %v1215
  %v1318 = vadd.f32 %v1144, %v1220
  %v1319 = vadd.f32 %v1145, %v1225
  %v1320 = vadd.f32 %v1146, %v1230
  %v1321 = vadd.f32 %v1147, %v1235
  %v1322 = vadd.f32 %v1148, %v1240
  %v1323 = vadd.f32 %v1149, %v1245
  %v1324 = vadd.f32 %v1150, %v1250
  %v1325 = vadd.f32 %v1151, %v1255
  %v1326 = vadd.f32 %v1152, %v1260
  %v1327 = vadd.f32 %v1153, %v1265
  %v1328 = vadd.f32 %v1154, %v1270
  %v1329 = vadd.f32 %v1155, %v1275
  %v1330 = vadd.f32 %v1156, %v1280
  %v1331 = vadd.f32 %v1157, %v1285
  %v1332 = vadd.f32 %v1158, %v1290
  %v1333 = vadd.f32 %v1159, %v1295
  %v1334 = vadd.f32 %v1160, %v1300
  %v1335 = vadd.f32 %v1161, %v1305
  %v1336 = vmax.f32 %v1307, 0.0
  %v1337 = vmax.f32 %v1308, 0.0
  %v1338 = vmax.f32 %v1309, 0.0
  %v1339 = vmax.f32 %v1310, 0.0
  %v1340 = vmax.f32 %v1311, 0.0
  %v1341 = vmax.f32 %v1312, 0.0
  %v1342 = vmax.f32 %v1313, 0.0
  %v1343 = vmax.f32 %v1314, 0.0
  %v1344 = vmax.f32 %v1315, 0.0
  %v1345 = vmax.f32 %v1316, 0.0
  %v1346 = vmax.f32 %v1317, 0.0
  %v1347 = vmax.f32 %v1318, 0.0
  %v1348 = vmax.f32 %v1319, 0.0
  %v1349 = vmax.f32 %v1320, 0.0
  %v1350 = vmax.f32 %v1321, 0.0
  %v1351 = vmax.f32 %v1322, 0.0
  %v1352 = vmax.f32 %v1323, 0.0
  %v1353 = vmax.f32 %v1324, 0.0
  %v1354 = vmax.f32 %v1325, 0.0
  %v1355 = vmax.f32 %v1326, 0.0
  %v1356 = vmax.f32 %v1327, 0.0
  %v1357 = vmax.f32 %v1328, 0.0
  %v1358 = vmax.f32 %v1329, 0.0
  %v1359 = vmax.f32 %v1330, 0.0
  %v1360 = vmax.f32 %v1331, 0.0
  %v1361 = vmax.f32 %v1332, 0.0
  %v1362 = vmax.f32 %v1333, 0.0
  %v1363 = vmax.f32 %v1334, 0.0
  %v1364 = vmax.f32 %v1335, 0.0
  %1365 = vst.msk [vmem:[%s3] sm:$0xff] %vm349, %v1336
  %1366 = vst.msk [vmem:[%s3 + $0x8] sm:$0xff] %vm349, %v1337
  %1367 = vst.msk [vmem:[%s3 + $0x10] sm:$0xff] %vm349, %v1338
  %1368 = vst.msk [vmem:[%s3 + $0x18] sm:$0xff] %vm349, %v1339
  %1369 = vst.msk [vmem:[%s3 + $0x20] sm:$0xff] %vm349, %v1340
  %1370 = vst.msk [vmem:[%s3 + $0x28] sm:$0xff] %vm349, %v1341
  %1371 = vst.msk [vmem:[%s3 + $0x30] sm:$0xff] %vm349, %v1342
  %1372 = vst.msk [vmem:[%s3 + $0x38] sm:$0xff] %vm349, %v1343
  %1373 = vst.msk [vmem:[%s3 + $0x40] sm:$0xff] %vm349, %v1344
  %1374 = vst.msk [vmem:[%s3 + $0x48] sm:$0xff] %vm349, %v1345
  %1375 = vst.msk [vmem:[%s3 + $0x50] sm:$0xff] %vm349, %v1346
  %1376 = vst.msk [vmem:[%s3 + $0x58] sm:$0xff] %vm349, %v1347
  %1377 = vst.msk [vmem:[%s3 + $0x60] sm:$0xff] %vm349, %v1348
  %1378 = vst.msk [vmem:[%s3 + $0x68] sm:$0xff] %vm349, %v1349
  %1379 = vst.msk [vmem:[%s3 + $0x70] sm:$0xff] %vm349, %v1350
  %1380 = vst.msk [vmem:[%s3 + $0x78] sm:$0xff] %vm349, %v1351
  %1381 = vst.msk [vmem:[%s3 + $0x80] sm:$0xff] %vm349, %v1352
  %1382 = vst.msk [vmem:[%s3 + $0x88] sm:$0xff] %vm349, %v1353
  %1383 = vst.msk [vmem:[%s3 + $0x90] sm:$0xff] %vm349, %v1354
  %1384 = vst.msk [vmem:[%s3 + $0x98] sm:$0xff] %vm349, %v1355
  %1385 = vst.msk [vmem:[%s3 + $0xa0] sm:$0xff] %vm349, %v1356
  %1386 = vst.msk [vmem:[%s3 + $0xa8] sm:$0xff] %vm349, %v1357
  %1387 = vst.msk [vmem:[%s3 + $0xb0] sm:$0xff] %vm349, %v1358
  %1388 = vst.msk [vmem:[%s3 + $0xb8] sm:$0xff] %vm349, %v1359
  %1389 = vst.msk [vmem:[%s3 + $0xc0] sm:$0xff] %vm349, %v1360
  %1390 = vst.msk [vmem:[%s3 + $0xc8] sm:$0xff] %vm349, %v1361
  %1391 = vst.msk [vmem:[%s3 + $0xd0] sm:$0xff] %vm349, %v1362
  %1392 = vst.msk [vmem:[%s3 + $0xd8] sm:$0xff] %vm349, %v1363
  %1393 = vst.msk [vmem:[%s3 + $0xe0] sm:$0xff] %vm349, %v1364
  // Predicated region
  $region14: #{tpu_custom_call.1} parent=0 // pred_check
    _
  $region15: #{tpu_custom_call.1} parent=0 // pred_check_branch
    %1395 = sbr.rel (0) target = $region17
  $region16: #{tpu_custom_call.1} parent=0 // pred_region
    _
  $region17: #{tpu_custom_call.1} parent=0 // pred_fallthru
    _
  // Predicated region
  $region18: #{tpu_custom_call.1} parent=0 // pred_check
    _
  $region19: #{tpu_custom_call.1} parent=0 // pred_check_branch
    %1397 = sbr.rel (0) target = $region21
  $region20: #{tpu_custom_call.1} parent=0 // pred_region
    _
  $region21: #{tpu_custom_call.1} parent=0 // pred_fallthru
    _

</llo_original>
